<compile_context>
chip_gen: v6e
topology: v6e:2x2x1
jax: 0.10.0
libtpu: 0.0.40
codegen_flags: <defaults>
</compile_context>

<pallas_src>
import jax
import jax.numpy as jnp
from jax.experimental import pallas as pl
from jax.experimental.pallas import tpu as pltpu


# ------------------------------- kernel ---------------------------------- #

def celeba_heads_kernel(x_ref, w_ref, b_ref, o_ref):
    # x_ref: (TB, D) producer dtype   w_ref: (D, Tp) bf16
    # b_ref: (1, Tp) f32              o_ref: (TB, Tp) out_dtype
    x = x_ref[...].astype(jnp.bfloat16)          # in-kernel cast: VPU work, hidden under DMA
    logits = jnp.dot(x, w_ref[...], preferred_element_type=jnp.float32)
    logits = logits + b_ref[...]                 # bias broadcast over batch tile
    # exp/recip land on the EUP slot (idle here); keep the epilogue in f32.
    o_ref[...] = jax.nn.sigmoid(logits).astype(o_ref.dtype)


# ------------------------------- wrapper ---------------------------------- #

def _round_up(n, m):
    return ((n + m - 1) // m) * m


def _vmem_bytes(tb, d, t_pad, x_dtype, out_dtype):
    """Double-buffered VMEM footprint of one grid step (worst case)."""
    xb = jnp.dtype(x_dtype).itemsize
    ob = jnp.dtype(out_dtype).itemsize
    return (tb * d * xb * 2            # x tile, double-buffered
            + d * t_pad * 2 * 2        # W (bf16), resident but budgeted as double-buffered
            + t_pad * 4 * 2            # bias (f32)
            + tb * t_pad * ob * 2)     # output tile, double-buffered


_VMEM_LIMIT_BYTES = 32 * 1024 * 1024   # explicit: v5e scoped default is only 16 MiB
_VMEM_BUDGET_BYTES = 24 * 1024 * 1024  # tile-sizing budget (headroom for internal scratch)


def celeba_wrapper_forward(x, w, b, *, max_batch_tile=4096,
                           out_dtype=jnp.bfloat16,
                           min_batch_for_kernel=256,
                           return_padded=False):
    """Fused per-task heads: equivalent to torch.cat([sigmoid(x @ W_t^T + b_t)], dim=1).

    x: (B, D) pooled features, w: (D, T) fused head weights, b: (T,) fused biases.
    Returns (B, T) probabilities in `out_dtype` (or (B, T_pad) if return_padded=True on
    the kernel path; padded columns are sigmoid(0)=0.5 and must be masked downstream).
    """
    B, D = x.shape
    T = w.shape[1]

    # Small-batch early-out: a pallas_call boundary (~0.35 us) + blocked fusion is a net
    # loss at tiny B (e.g. the literal CelebA head shapes); let XLA fuse with the trunk.
    if B < min_batch_for_kernel:
        logits = jnp.dot(x.astype(jnp.bfloat16), w.astype(jnp.bfloat16),
                         preferred_element_type=jnp.float32) + b[None, :].astype(jnp.float32)
        return jax.nn.sigmoid(logits).astype(out_dtype)   # already (B, T); no padding here

    # Lane-dense task axis: pad T up to a multiple of 128 -> unmasked vst stores.
    T_pad = _round_up(max(T, 128), 128)

    # Small, one-shot wrapper ops over the tiny weight/bias only (x is left untouched).
    w_p = jnp.pad(w.astype(jnp.bfloat16), ((0, 0), (0, T_pad - T)))
    b_p = jnp.pad(b.astype(jnp.float32), (0, T_pad - T)).reshape(1, T_pad)

    # Batch tile: multiple of 16 (bf16 output packing), capped by max_batch_tile and by
    # ~B/2 so the "parallel" grid axis has >=2 steps (v7x: shard across both TCs).
    tb = min(_round_up(max_batch_tile, 16), max(_round_up(-(-B // 2), 16), 16))
    while _vmem_bytes(tb, D, T_pad, x.dtype, out_dtype) > _VMEM_BUDGET_BYTES and tb > 16:
        tb = max(16, _round_up(tb // 2, 16))
    if tb >= B:
        tb = B   # single block == full batch dim (always a legal block shape)

    grid = (pl.cdiv(B, tb),)   # ragged last block handled by Pallas; no batch pad of x

    out = pl.pallas_call(
        celeba_heads_kernel,
        out_shape=jax.ShapeDtypeStruct((B, T_pad), out_dtype),
        grid_spec=pltpu.PrefetchScalarGridSpec(
            num_scalar_prefetch=0,
            grid=grid,
            in_specs=[
                pl.BlockSpec((tb, D), lambda i: (i, 0)),        # x: tiled over batch
                pl.BlockSpec((D, T_pad), lambda i: (0, 0)),     # W: resident
                pl.BlockSpec((1, T_pad), lambda i: (0, 0)),     # b: resident
            ],
            out_specs=pl.BlockSpec((tb, T_pad), lambda i: (i, 0)),
        ),
        compiler_params=pltpu.CompilerParams(
            dimension_semantics=("parallel",),                  # megacore / v7x 2-TC sharding
            vmem_limit_bytes=_VMEM_LIMIT_BYTES,
        ),
    )(x, w_p, b_p)

    if return_padded:
        return out            # caller masks padded columns; saves one HBM pass over out
    return out[:, :T]         # under jit this trailing slice fuses into the consumer


# --------------------------- params / reference --------------------------- #

def make_params(key, num_tasks, feat_dim):
    """Deterministic synthetic per-task head params: heads[t] = Linear(feat_dim, 1) + Sigmoid."""
    kw, kb = jax.random.split(key)
    per_task_w = jax.random.normal(kw, (num_tasks, 1, feat_dim), dtype=jnp.float32) * 0.02
    per_task_b = jax.random.normal(kb, (num_tasks, 1), dtype=jnp.float32) * 0.02
    w_fused = jnp.transpose(per_task_w[:, 0, :], (1, 0))          # (feat_dim, num_tasks)
    b_fused = per_task_b[:, 0]                                    # (num_tasks,)
    return w_fused, b_fused


def reference_forward(x, w, b):
    # Same numerics as the kernel pre-store: bf16 operands, f32 accumulation, f32 sigmoid.
    xb = x.astype(jnp.bfloat16)
    wb = w.astype(jnp.bfloat16)
    logits = jnp.dot(xb, wb, preferred_element_type=jnp.float32) + b[None, :]
    return jax.nn.sigmoid(logits)


def reference_forward_f32(x, w, b):
    # Full-precision reference of the PyTorch forward (loose-tolerance sanity check).
    return jax.nn.sigmoid(
        jnp.dot(x, w, precision=jax.lax.Precision.HIGHEST) + b[None, :])


# --------------------------------- main ----------------------------------- #

if __name__ == "__main__":
    key = jax.random.PRNGKey(0)
    kx, kp, kx2 = jax.random.split(key, 3)

    # Small shapes consistent with the module: 40 CelebA attribute heads (each -> 1 sigmoid
    # output), pooled feature dim 128, concat -> (B, 40).
    B, D, T = 8, 128, 40
    x = jax.random.normal(kx, (B, D), dtype=jnp.float32)
    w, b = make_params(kp, T, D)
    ref = reference_forward(x, w, b)

    # 1) Kernel path forced at the literal head shapes (min_batch_for_kernel=1),
    #    default bf16 output.
    out = jax.block_until_ready(
        celeba_wrapper_forward(x, w, b, min_batch_for_kernel=1))
    assert out.shape == (B, T), out.shape
    assert out.dtype == jnp.bfloat16
    assert jnp.allclose(out.astype(jnp.float32), ref, atol=5e-3, rtol=5e-3)
    assert jnp.allclose(out.astype(jnp.float32), reference_forward_f32(x, w, b),
                        atol=1e-2, rtol=1e-2)

    # 2) Multi-step ragged grid (B not a tile multiple, no batch padding), f32 output path.
    B2 = 40
    x2 = jax.random.normal(kx2, (B2, D), dtype=jnp.float32)
    out2 = jax.block_until_ready(
        celeba_wrapper_forward(x2, w, b, max_batch_tile=16,
                               min_batch_for_kernel=1, out_dtype=jnp.float32))
    assert out2.shape == (B2, T), out2.shape
    assert jnp.allclose(out2, reference_forward(x2, w, b), atol=1e-4, rtol=1e-4)

    # 3) Small-batch early-out (default threshold): plain XLA path, fuses with the trunk.
    out3 = jax.block_until_ready(celeba_wrapper_forward(x, w, b))
    assert out3.shape == (B, T), out3.shape
    assert jnp.allclose(out3.astype(jnp.float32), ref, atol=5e-3, rtol=5e-3)

    # TODO(synk): losses()/STA random subset-mask generation (BCE + randperm masks) is
    # host-side training logic, not part of the forward hot path, and is left unimplemented.
    print("KERNEL_OK")
</pallas_src>

<mosaic_0001>
module attributes {stable_mosaic.version = 11 : i64} {
  func.func @celeba_heads_kernel(%arg0: i32, %arg1: memref<8x128xf32, #tpu.memory_space<vmem>>, %arg2: memref<128x128xbf16, #tpu.memory_space<vmem>>, %arg3: memref<1x128xf32, #tpu.memory_space<vmem>>, %arg4: memref<8x128xbf16, #tpu.memory_space<vmem>>) attributes {dimension_semantics = [#tpu.dimension_semantics<parallel>], iteration_bounds = array<i64: 1>, scalar_prefetch = 0 : i64, scratch_operands = 0 : i64, tpu.core_type = #tpu.core_type<tc>, window_params = [{transform_indices = @transform_0, window_bounds = array<i64: 8, 128>}, {pipeline_mode = #tpu.pipeline_mode<synchronous>, transform_indices = @transform_1, window_bounds = array<i64: 128, 128>}, {pipeline_mode = #tpu.pipeline_mode<synchronous>, transform_indices = @transform_2, window_bounds = array<i64: 1, 128>}, {transform_indices = @transform_3, window_bounds = array<i64: 8, 128>}]} {
    %c0 = arith.constant 0 : index
    %c0_0 = arith.constant 0 : index
    %0 = vector.load %arg1[%c0, %c0_0] : memref<8x128xf32, #tpu.memory_space<vmem>>, vector<8x128xf32>
    %1 = arith.truncf %0 : vector<8x128xf32> to vector<8x128xbf16>
    %c0_1 = arith.constant 0 : index
    %c0_2 = arith.constant 0 : index
    %2 = vector.load %arg2[%c0_1, %c0_2] : memref<128x128xbf16, #tpu.memory_space<vmem>>, vector<128x128xbf16>
    %cst = arith.constant dense<0.000000e+00> : vector<8x128xf32>
    %3 = tpu.matmul %1, %2, %cst {dimension_numbers = #tpu.dot_dimension_numbers<[1], [0], [0], [1], [0, 0, 1, 1], [], []>} : vector<8x128xbf16>, vector<128x128xbf16>, vector<8x128xf32> -> vector<8x128xf32>
    %c0_3 = arith.constant 0 : index
    %c0_4 = arith.constant 0 : index
    %4 = vector.load %arg3[%c0_3, %c0_4] : memref<1x128xf32, #tpu.memory_space<vmem>>, vector<1x128xf32>
    %5 = vector.broadcast %4 : vector<1x128xf32> to vector<8x128xf32>
    %6 = arith.addf %3, %5 : vector<8x128xf32>
    %7 = arith.negf %6 : vector<8x128xf32>
    %8 = math.exp %7 : vector<8x128xf32>
    %cst_5 = arith.constant 1.000000e+00 : f32
    %9 = vector.broadcast %cst_5 : f32 to vector<8x128xf32>
    %10 = arith.addf %9, %8 : vector<8x128xf32>
    %11 = arith.divf %9, %10 : vector<8x128xf32>
    %12 = arith.truncf %11 : vector<8x128xf32> to vector<8x128xbf16>
    %c0_6 = arith.constant 0 : index
    %c0_7 = arith.constant 0 : index
    %13 = vector.load %arg4[%c0_6, %c0_7] : memref<8x128xbf16, #tpu.memory_space<vmem>>, vector<8x128xbf16>
    tpu.vector_store %arg4[%c0_6, %c0_7], %12 {strides = array<i32>} : memref<8x128xbf16, #tpu.memory_space<vmem>>, vector<8x128xbf16>,
    return
  }
  func.func @transform_0(%arg0: i32) -> (i32, i32) {
    %c0_i32 = arith.constant 0 : i32
    %c0_i32_0 = arith.constant 0 : i32
    return %arg0, %c0_i32 : i32, i32
  }
  func.func @transform_1(%arg0: i32) -> (i32, i32) {
    %c0_i32 = arith.constant 0 : i32
    %c0_i32_0 = arith.constant 0 : i32
    %c0_i32_1 = arith.constant 0 : i32
    return %c0_i32, %c0_i32_0 : i32, i32
  }
  func.func @transform_2(%arg0: i32) -> (i32, i32) {
    %c0_i32 = arith.constant 0 : i32
    %c0_i32_0 = arith.constant 0 : i32
    %c0_i32_1 = arith.constant 0 : i32
    return %c0_i32, %c0_i32_0 : i32, i32
  }
  func.func @transform_3(%arg0: i32) -> (i32, i32) {
    %c0_i32 = arith.constant 0 : i32
    %c0_i32_0 = arith.constant 0 : i32
    return %arg0, %c0_i32 : i32, i32
  }
}

</mosaic_0001>

<llo_original>
// kernel: tpu_custom_call.1
$region0: #{tpu_custom_call.1}
  #allocation0 [shape = 'u32[]', space=smem, size = 0x4, offset = 0x4, fixed_abs, tag = 'smem constant byte address 0x4 - core index']
  #allocation1 [shape = 'u32[144,128]{1,0:T(1,128)}', space=vmem, size = 0x12000, scoped, tag = 'internal scratch']
  %s0 = inlined_call_operand.hbm [shape: f32[8,128], index: 0, kind: input, shape index: {}]
  %s1 = inlined_call_operand.hbm [shape: bf16[128,128], index: 1, kind: input, shape index: {}]
  %s2 = inlined_call_operand.vmem [shape: f32[1,128], index: 2, kind: input, shape index: {}]
  %s3 = inlined_call_operand.hbm [shape: bf16[8,128], index: 3, kind: output, shape index: {}]
  %s4 = sld [smem:[#allocation0]]
  $region30: #{tpu_custom_call.1} parent=0
    _
  %s6 = ssub.s32 1, %s4
  %s7 = scalar_select 0, %s6, %s4
  $region1: #{tpu_custom_call.1} parent=0
    #allocation2 [shape = 'u8[4096]{0}', space=vmem, size = 0x1000, scoped, tag = 'input window, operand 0, single buffered']
    #allocation3 [shape = 's32[1]{0}', space=sflag, size = 0x4, scoped, tag = 'scoped memory for tpu_custom_call.1']
    #allocation4 [shape = 's32[1]{0}', space=sflag, size = 0x4, scoped, tag = 'scoped memory for tpu_custom_call.1']
    #allocation5 [shape = 'u8[32768]{0}', space=vmem, size = 0x8000, scoped, tag = 'input window, operand 1, single buffered']
    #allocation6 [shape = 's32[1]{0}', space=sflag, size = 0x4, scoped, tag = 'scoped memory for tpu_custom_call.1']
    #allocation7 [shape = 'u8[2048]{0}', space=vmem, size = 0x800, scoped, tag = 'output window, operand 0, single buffered']
    %8 = vsyncpa [#allocation3], 0
    %9 = vsyncpa [#allocation6], 0
    %10 = vsyncpa [#allocation4], 0
    // Predicated region
    $region2: #{tpu_custom_call.1} parent=1 // pred_check
      _
    $region3: #{tpu_custom_call.1} parent=1 // pred_check_branch
      %12 = sbr.rel (0) target = $region5
    $region4: #{tpu_custom_call.1} parent=1 // pred_region
      %s14 = ssub.s32 128, 128
      %15 = vsyncadd [#allocation3], %s14
      %s17 = sshll.u32 [#allocation2], 4
      %s18 = int_to_ptr.vmem [resolvable:$true] %s17
      %20 = dma.hbm_to_vmem [thread:$0]  %s0, 128, %s18, [#allocation3]
    $region5: #{tpu_custom_call.1} parent=1 // pred_fallthru
      _
    // Predicated region
    $region6: #{tpu_custom_call.1} parent=1 // pred_check
      _
    $region7: #{tpu_custom_call.1} parent=1 // pred_check_branch
      %22 = sbr.rel (0) target = $region9
    $region8: #{tpu_custom_call.1} parent=1 // pred_region
      %s24 = ssub.s32 1024, 1024
      %25 = vsyncadd [#allocation6], %s24
      %s26 = sshll.u32 [#allocation5], 4
      %s27 = int_to_ptr.vmem [resolvable:$true] %s26
      %32 = dma.hbm_to_vmem [thread:$0]  %s1, 1024, %s27, [#allocation6], 64, 64, 4
    $region9: #{tpu_custom_call.1} parent=1 // pred_fallthru
      _
    // Predicated region
    $region10: #{tpu_custom_call.1} parent=1 // pred_check
      _
    $region11: #{tpu_custom_call.1} parent=1 // pred_check_branch
      %34 = sbr.rel (0) target = $region13
    $region12: #{tpu_custom_call.1} parent=1 // pred_region
      _
    $region13: #{tpu_custom_call.1} parent=1 // pred_fallthru
      _
    // Predicated region
    $region14: #{tpu_custom_call.1} parent=1 // pred_check
      _
    $region15: #{tpu_custom_call.1} parent=1 // pred_check_branch
      %36 = sbr.rel (0) target = $region17
    $region16: #{tpu_custom_call.1} parent=1 // pred_region
      %37 = dma.done [#allocation3], 128
    $region17: #{tpu_custom_call.1} parent=1 // pred_fallthru
      _
    // Predicated region
    $region18: #{tpu_custom_call.1} parent=1 // pred_check
      _
    $region19: #{tpu_custom_call.1} parent=1 // pred_check_branch
      %39 = sbr.rel (0) target = $region21
    $region20: #{tpu_custom_call.1} parent=1 // pred_region
      %40 = dma.done [#allocation6], 1024
    $region21: #{tpu_custom_call.1} parent=1 // pred_fallthru
      _
    %v42 = vld [vmem:[#allocation2] sm:$0xff]
    %v43 = vpack.c.bf16 %v42, %v42
    %v44 = vld [vmem:[#allocation5] sm:$0xf]
    %v45 = vld [vmem:[#allocation5 + $0x4] sm:$0xf]
    %v46 = vld [vmem:[#allocation5 + $0x8] sm:$0xf]
    %v47 = vld [vmem:[#allocation5 + $0xc] sm:$0xf]
    %v48 = vld [vmem:[#allocation5 + $0x10] sm:$0xf]
    %v49 = vld [vmem:[#allocation5 + $0x14] sm:$0xf]
    %v50 = vld [vmem:[#allocation5 + $0x18] sm:$0xf]
    %v51 = vld [vmem:[#allocation5 + $0x1c] sm:$0xf]
    %v52 = vld [vmem:[#allocation5 + $0x20] sm:$0xf]
    %v53 = vld [vmem:[#allocation5 + $0x24] sm:$0xf]
    %v54 = vld [vmem:[#allocation5 + $0x28] sm:$0xf]
    %v55 = vld [vmem:[#allocation5 + $0x2c] sm:$0xf]
    %v56 = vld [vmem:[#allocation5 + $0x30] sm:$0xf]
    %v57 = vld [vmem:[#allocation5 + $0x34] sm:$0xf]
    %v58 = vld [vmem:[#allocation5 + $0x38] sm:$0xf]
    %v59 = vld [vmem:[#allocation5 + $0x3c] sm:$0xf]
    %v60 = vld [vmem:[%s2] sm:$0x1]
    %v62 = vlaneseq
    %v63 = vshrl.u32 %v62, 7
    %v64 = vsub.s32 0, %v63
    %v65 = vrot.slane %v60, %v64
    %v83 = vunpack.c.l.b16 %v44
    %v84 = vunpack.c.l.b16 %v45
    %v85 = vunpack.c.l.b16 %v46
    %v86 = vunpack.c.l.b16 %v47
    %v87 = vunpack.c.l.b16 %v48
    %v88 = vunpack.c.l.b16 %v49
    %v89 = vunpack.c.l.b16 %v50
    %v90 = vunpack.c.l.b16 %v51
    %v91 = vunpack.c.l.b16 %v52
    %v92 = vunpack.c.l.b16 %v53
    %v93 = vunpack.c.l.b16 %v54
    %v94 = vunpack.c.l.b16 %v55
    %v95 = vunpack.c.l.b16 %v56
    %v96 = vunpack.c.l.b16 %v57
    %v97 = vunpack.c.l.b16 %v58
    %v98 = vunpack.c.l.b16 %v59
    %v99 = vpack.c.b16 %v84, %v83
    %v100 = vpack.c.b16 %v86, %v85
    %v101 = vpack.c.b16 %v88, %v87
    %v102 = vpack.c.b16 %v90, %v89
    %v103 = vpack.c.b16 %v92, %v91
    %v104 = vpack.c.b16 %v94, %v93
    %v105 = vpack.c.b16 %v96, %v95
    %v106 = vpack.c.b16 %v98, %v97
    %115 = vmatprep.subr.bf16.mxu0 0
    %116 = vmatpush1.bf16.msra.mxu0 %v106
    %117 = vmatprep.subr.bf16.mxu0 0
    %118 = vmatpush1.bf16.msra.mxu0 %v105
    %119 = vmatprep.subr.bf16.mxu0 0
    %120 = vmatpush1.bf16.msra.mxu0 %v104
    %121 = vmatprep.subr.bf16.mxu0 0
    %122 = vmatpush1.bf16.msra.mxu0 %v103
    %123 = vmatprep.subr.bf16.mxu0 0
    %124 = vmatpush1.bf16.msra.mxu0 %v102
    %125 = vmatprep.subr.bf16.mxu0 0
    %126 = vmatpush1.bf16.msra.mxu0 %v101
    %127 = vmatprep.subr.bf16.mxu0 0
    %128 = vmatpush1.bf16.msra.mxu0 %v100
    %129 = vmatprep.subr.bf16.mxu0 0
    %130 = vmatpush1.bf16.msra.mxu0 %v99
    %131 = vmatprep.subr.bf16.mxu0 0
    %132 = vmatpush2.bf16.msra.mxu0 0
    %133 = vmatprep.subr.bf16.mxu0 0
    %134 = vmatpush2.bf16.msra.mxu0 0
    %135 = vmatprep.subr.bf16.mxu0 0
    %136 = vmatpush2.bf16.msra.mxu0 0
    %137 = vmatprep.subr.bf16.mxu0 0
    %138 = vmatpush2.bf16.msra.mxu0 0
    %139 = vmatprep.subr.bf16.mxu0 0
    %140 = vmatpush2.bf16.msra.mxu0 0
    %141 = vmatprep.subr.bf16.mxu0 0
    %142 = vmatpush2.bf16.msra.mxu0 0
    %143 = vmatprep.subr.bf16.mxu0 0
    %144 = vmatpush2.bf16.msra.mxu0 0
    %145 = vmatprep.subr.bf16.mxu0 0
    %146 = vmatpush2.bf16.msra.mxu0 0
    %147 = vmatprep.mubr.bf16.mxu0 0
    %148 = vmatmul.mubr.bf16.gmra.mxu0 %v43
    %v149 = vpop.f32.mrf.mxu0
    %v150 = vadd.f32 %v65, %v149
    %v151 = vpop.f32.mrf.mxu0
    %v152 = vpop.f32.mrf.mxu0
    %v153 = vpop.f32.mrf.mxu0
    %154 = vdwg.mxu0
    %v155 = vxor.u32 %v150, 2147483648
    %v156 = vmul.f32 %v155, 1.442695
    %v157 = vpow.pop %v156
    %v158 = vadd.f32 %v157, 1.0
    %v159 = vrcp.pop %v158
    %v160 = vmul.f32 1.0, %v159
    %v161 = vpack.c.bf16 %v160, %v160
    %162 = vst [vmem:[#allocation7] sm:$0xf] %v161
    // Predicated region
    $region22: #{tpu_custom_call.1} parent=1 // pred_check
      _
    $region23: #{tpu_custom_call.1} parent=1 // pred_check_branch
      %164 = sbr.rel (0) target = $region25
    $region24: #{tpu_custom_call.1} parent=1 // pred_region
      %s166 = ssub.s32 64, 64
      %167 = vsyncadd [#allocation4], %s166
      %s169 = sshll.u32 [#allocation7], 4
      %s170 = int_to_ptr.vmem [resolvable:$true] %s169
      %172 = dma.vmem_to_hbm [thread:$0]  %s170, 64, %s3, [#allocation4]
    $region25: #{tpu_custom_call.1} parent=1 // pred_fallthru
      _
    // Predicated region
    $region26: #{tpu_custom_call.1} parent=1 // pred_check
      _
    $region27: #{tpu_custom_call.1} parent=1 // pred_check_branch
      %174 = sbr.rel (0) target = $region29
    $region28: #{tpu_custom_call.1} parent=1 // pred_region
      %175 = dma.done [#allocation4], 64
    $region29: #{tpu_custom_call.1} parent=1 // pred_fallthru
      _
    %176 = vsyncpa [#allocation3], 1
    %177 = vsyncpa [#allocation6], 1
    %178 = vsyncpa [#allocation4], 1

</llo_original>
